<compile_context>
chip_gen: v7x
topology: tpu7x:2x2x1
jax: 0.10.0
libtpu: 0.0.40
codegen_flags: <defaults>
</compile_context>

<pallas_src>
import jax
import jax.numpy as jnp
from jax.experimental import pallas as pl
from jax.experimental.pallas import tpu as pltpu


# ----------------------------------------------------------------------------
# Single step: x_next = x**2 + 1 + u  (y is identical to x_next pre-noise)
# ----------------------------------------------------------------------------
def _step_kernel(x_ref, u_ref, o_ref):
    x = x_ref[...]
    o_ref[...] = x * x + 1.0 + u_ref[...]


@jax.jit
def nonlinear_forward(x, u):
    """Pallas equivalent of NonLinearModel.forward.

    Args:
      x: (batch, 1, state_dim) float32
      u: (batch, 1, input_dim) float32
    Returns:
      (x_next, y), both (batch, 1, state_dim). y is the same (noiseless) value.
    """
    b, one, d = x.shape
    assert one == 1 and u.shape == (b, 1, d)
    out = pl.pallas_call(
        _step_kernel,
        out_shape=jax.ShapeDtypeStruct((b, d), x.dtype),
        in_specs=[pl.BlockSpec(memory_space=pltpu.MemorySpace.VMEM)] * 2,
        out_specs=pl.BlockSpec(memory_space=pltpu.MemorySpace.VMEM),
    )(x.reshape(b, d), u.reshape(b, d))
    out = out.reshape(b, 1, d)
    # y == x_next before noise; no duplicated output from the kernel.
    return out, out


def nonlinear_noisy_forward(x, u, noise_std, key):
    """NonLinearModel.noisy_forward: add Gaussian noise to the output."""
    x_next, y = nonlinear_forward(x, u)
    noise = jax.random.normal(key, y.shape, dtype=y.dtype) * noise_std
    return x_next, y + noise


# ----------------------------------------------------------------------------
# Fused open-loop rollout (NonLinearModel.run / __call__)
# ----------------------------------------------------------------------------
def _rollout_kernel(x0_ref, u_ref, noise_ref, y_ref):
    """One kernel for the whole trajectory.

    x0_ref:    (B, D)     initial state
    u_ref:     (B, H, D)  external inputs u_0 .. u_{H-1}
    noise_ref: (B, H, D)  pre-scaled output noise for each stored y_t
    y_ref:     (B, H, D)  output trajectory

      y_0 = x_0 + n_0
      x_t = x_{t-1}**2 + 1 + u_{t-1}   (t = 1..H-1)
      y_t = x_t + n_t
    """
    h = y_ref.shape[1]
    x = x0_ref[...]            # state lives in vregs across the whole recurrence
    u = u_ref[...]             # hoisted single loads of the full blocks
    noise = noise_ref[...]

    y_ref[:, 0, :] = x + noise[:, 0, :]
    for t in range(1, h):      # horizon is a compile-time constant -> unrolled
        x = x * x + 1.0 + u[:, t - 1, :]
        y_ref[:, t, :] = x + noise[:, t, :]


@jax.jit
def nonlinear_run(x0, u_ext, noise_std, key):
    """NonLinearModel.run / __call__: open-loop rollout, one pallas_call total.

    Args:
      x0:    (batch, 1, state_dim) or (1, 1, state_dim) or (1,) initial state
      u_ext: (batch, horizon, input_dim) external input
    Returns:
      y_traj: (batch, horizon, output_dim)
    """
    batch, horizon, d = u_ext.shape

    # x0 broadcasting cases from the reference module.
    if x0.shape == (batch, 1, d):
        x0b = x0
    elif x0.shape == (1, 1, d):
        x0b = jnp.broadcast_to(x0, (batch, 1, d))
    elif x0.shape == (1,):
        x0b = jnp.broadcast_to(x0.reshape(1, 1, -1), (batch, 1, d))
    else:
        raise ValueError("Wrong shape of initial conditions")

    # Single RNG op for all stored outputs (replaces per-step randn_like calls).
    noise = jax.random.normal(key, (batch, horizon, d), dtype=u_ext.dtype) * noise_std

    y_traj = pl.pallas_call(
        _rollout_kernel,
        out_shape=jax.ShapeDtypeStruct((batch, horizon, d), u_ext.dtype),
        in_specs=[pl.BlockSpec(memory_space=pltpu.MemorySpace.VMEM)] * 3,
        out_specs=pl.BlockSpec(memory_space=pltpu.MemorySpace.VMEM),
    )(x0b.reshape(batch, d), u_ext, noise)
    return y_traj


if __name__ == "__main__":
    # Small deterministic shapes: batch=2, state_dim=input_dim=output_dim=32,
    # horizon=8, noise_std=0.01.
    state_dim = 32
    batch = 2
    horizon = 8
    noise_std = 0.01

    key = jax.random.PRNGKey(0)
    kx, ku, krun = jax.random.split(key, 3)
    x0 = jax.random.normal(kx, (batch, 1, state_dim), dtype=jnp.float32)
    u_ext = jax.random.normal(ku, (batch, horizon, state_dim), dtype=jnp.float32)

    # 1) Single deterministic forward step + correctness check.
    x_next, y = nonlinear_forward(x0, u_ext[:, 0:1, :])
    jax.block_until_ready((x_next, y))
    ref_step = x0 ** 2 + 1.0 + u_ext[:, 0:1, :]
    assert jnp.allclose(x_next, ref_step, atol=1e-6)
    assert jnp.allclose(y, ref_step, atol=1e-6)

    # 2) Fused open-loop rollout (run / __call__) + correctness check against a
    #    pure-JAX reference using the identical noise tensor.
    y_traj = nonlinear_run(x0, u_ext, noise_std, krun)
    jax.block_until_ready(y_traj)
    assert y_traj.shape == (batch, horizon, state_dim)

    noise = jax.random.normal(krun, (batch, horizon, state_dim), dtype=jnp.float32) * noise_std
    x_ref = x0[:, 0, :]
    rows = [x_ref + noise[:, 0, :]]
    for t in range(1, horizon):
        x_ref = x_ref ** 2 + 1.0 + u_ext[:, t - 1, :]
        rows.append(x_ref + noise[:, t, :])
    y_ref_traj = jnp.stack(rows, axis=1)
    assert jnp.allclose(y_traj, y_ref_traj, atol=1e-5)

    print("KERNEL_OK")
</pallas_src>

<mosaic_0001>
module attributes {stable_mosaic.version = 11 : i64} {
  func.func @_step_kernel(%arg0: memref<2x32xf32, #tpu.memory_space<vmem>>, %arg1: memref<2x32xf32, #tpu.memory_space<vmem>>, %arg2: memref<2x32xf32, #tpu.memory_space<vmem>>) attributes {dimension_semantics = [], scalar_prefetch = 0 : i64, scratch_operands = 0 : i64, tpu.core_type = #tpu.core_type<tc>} {
    %c0 = arith.constant 0 : index
    %c0_0 = arith.constant 0 : index
    %0 = vector.load %arg0[%c0, %c0_0] : memref<2x32xf32, #tpu.memory_space<vmem>>, vector<2x32xf32>
    %1 = arith.mulf %0, %0 : vector<2x32xf32>
    %cst = arith.constant 1.000000e+00 : f32
    %2 = vector.broadcast %cst : f32 to vector<2x32xf32>
    %3 = arith.addf %1, %2 : vector<2x32xf32>
    %c0_1 = arith.constant 0 : index
    %c0_2 = arith.constant 0 : index
    %4 = vector.load %arg1[%c0_1, %c0_2] : memref<2x32xf32, #tpu.memory_space<vmem>>, vector<2x32xf32>
    %5 = arith.addf %3, %4 : vector<2x32xf32>
    %c0_3 = arith.constant 0 : index
    %c0_4 = arith.constant 0 : index
    %6 = vector.load %arg2[%c0_3, %c0_4] : memref<2x32xf32, #tpu.memory_space<vmem>>, vector<2x32xf32>
    tpu.vector_store %arg2[%c0_3, %c0_4], %5 {strides = array<i32>} : memref<2x32xf32, #tpu.memory_space<vmem>>, vector<2x32xf32>,
    return
  }
}

</mosaic_0001>

<llo_original>
// kernel: nonlinear_forward.1
$region0: #{nonlinear_forward.1}
  #allocation0 [shape = 'u32[]', space=smem, size = 0x4, offset = 0x4, fixed_abs, tag = 'smem constant byte address 0x4 - core index']
  #allocation1 [shape = 'u32[144,128]{1,0:T(1,128)}', space=vmem, size = 0x12000, scoped, tag = 'internal scratch']
  %s0 = inlined_call_operand.vmem [shape: f32[2,32], index: 0, kind: input, shape index: {}]
  %s1 = inlined_call_operand.vmem [shape: f32[2,32], index: 1, kind: input, shape index: {}]
  %s2 = inlined_call_operand.vmem [shape: f32[2,32], index: 2, kind: output, shape index: {}]
  %s3 = sld [smem:[#allocation0]]
  $region18: #{nonlinear_forward.1} parent=0
    _
  %s5 = ssub.s32 1, %s3
  %s6 = scalar_select 0, %s5, %s3
  // Predicated region
  $region2: #{nonlinear_forward.1} parent=0 // pred_check
    _
  $region3: #{nonlinear_forward.1} parent=0 // pred_check_branch
    %8 = sbr.rel (0) target = $region5
  $region4: #{nonlinear_forward.1} parent=0 // pred_region
    _
  $region5: #{nonlinear_forward.1} parent=0 // pred_fallthru
    _
  // Predicated region
  $region6: #{nonlinear_forward.1} parent=0 // pred_check
    _
  $region7: #{nonlinear_forward.1} parent=0 // pred_check_branch
    %10 = sbr.rel (0) target = $region9
  $region8: #{nonlinear_forward.1} parent=0 // pred_region
    _
  $region9: #{nonlinear_forward.1} parent=0 // pred_fallthru
    _
  %v11 = vld [vmem:[%s0] sm:$0x3]
  %v12 = vmul.f32 %v11, %v11
  %v13 = vadd.f32 %v12, 1.0
  %v14 = vld [vmem:[%s1] sm:$0x3]
  %v15 = vadd.f32 %v13, %v14
  %vm16 = vcmask 254976
  %17 = vst.msk [vmem:[%s2] sm:$0x3] %vm16, %v15
  // Predicated region
  $region10: #{nonlinear_forward.1} parent=0 // pred_check
    _
  $region11: #{nonlinear_forward.1} parent=0 // pred_check_branch
    %19 = sbr.rel (0) target = $region13
  $region12: #{nonlinear_forward.1} parent=0 // pred_region
    _
  $region13: #{nonlinear_forward.1} parent=0 // pred_fallthru
    _
  // Predicated region
  $region14: #{nonlinear_forward.1} parent=0 // pred_check
    _
  $region15: #{nonlinear_forward.1} parent=0 // pred_check_branch
    %21 = sbr.rel (0) target = $region17
  $region16: #{nonlinear_forward.1} parent=0 // pred_region
    _
  $region17: #{nonlinear_forward.1} parent=0 // pred_fallthru
    _

</llo_original>
